<compile_context>
chip_gen: v7x
topology: tpu7x:2x2x1
jax: 0.10.0
libtpu: 0.0.40
codegen_flags: <defaults>
</compile_context>

<pallas_src>
import functools

import jax
import jax.numpy as jnp
from jax import lax
from jax.experimental import pallas as pl
from jax.experimental.pallas import tpu as pltpu


def _round_up(n, m):
    return ((n + m - 1) // m) * m


def _vmem_budget_bytes():
    """Physical VMEM per TensorCore minus headroom for compiler scratch."""
    try:
        cap = int(pltpu.get_tpu_info().vmem_capacity_bytes)
    except Exception:
        cap = 64 * 1024 * 1024          # conservative fallback (v7x-sized)
    return max(cap - 16 * 1024 * 1024, 16 * 1024 * 1024)


def _cos_classifier_kernel(x_ref, w_ref, row_scale_ref, inv_nb_ref, o_ref):
    """One (tb, tc) tile of cosine similarities: MXU dot + two broadcast muls."""
    dots = lax.dot_general(
        x_ref[...], w_ref[...],
        dimension_numbers=(((1,), (1,)), ((), ())),   # contract D on both sides
        preferred_element_type=jnp.float32)           # (tb, tc) f32 accumulate

    # row_scale = 1/(max(||x_i||,1e-12) * max(||x_i||/max(||x_i||,1e-12),1e-4))
    # inv_nb    = 1/max(||W_j||, 1e-4)
    # Both are precomputed in the wrapper; only C-wide elementwise work here.
    o_ref[...] = (dots * row_scale_ref[...] * inv_nb_ref[...]).astype(o_ref.dtype)


@functools.partial(jax.jit,
                   static_argnames=("tb", "tc", "out_dtype", "compute_dtype"))
def cos_classifier(x, w_normalized, *, tb=512, tc=256,
                   out_dtype=jnp.float32, compute_dtype=None):
    """x: (B, D) raw embeddings; w_normalized: (C, D) L2-normalized class means.

    Returns (B, C) cosine similarities, matching the PyTorch CosClassifier.
    Optionally cast matmul operands with compute_dtype (e.g. jnp.bfloat16).
    """
    B, D = x.shape
    C, Dw = w_normalized.shape
    assert D == Dw

    # Keep the operands needed for the row/col norms in their original
    # precision; only the matmul operands are (optionally) down-cast.
    x_f32 = x.astype(jnp.float32)
    w_f32 = w_normalized.astype(jnp.float32)
    if compute_dtype is not None:
        x = x.astype(compute_dtype)
        w_normalized = w_normalized.astype(compute_dtype)

    x_bytes = x.dtype.itemsize
    w_bytes = w_normalized.dtype.itemsize
    out_bytes = jnp.dtype(out_dtype).itemsize

    # Clamp tiles to the problem size while keeping (8, 128) alignment.
    tb = max(8, min(tb, _round_up(B, 8)))
    tc = max(128, min(tc, _round_up(C, 128)))

    budget = _vmem_budget_bytes()

    def working_set(tb_, tc_):
        return (2 * tb_ * D * x_bytes          # x tile (double-buffered)
                + 2 * tc_ * D * w_bytes        # W tile
                + 2 * tb_ * tc_ * out_bytes    # output tile
                + 2 * (tb_ + tc_) * 4)         # row/col scale vectors

    # Shrink tb first (it dominates the footprint), then tc, until it fits.
    while working_set(tb, tc) > budget and tb > 8:
        tb = max(8, _round_up(tb // 2, 8))
    while working_set(tb, tc) > budget and tc > 128:
        tc = max(128, tc // 2)

    B_pad = _round_up(B, tb)
    C_pad = _round_up(C, tc)

    x_p = x if B_pad == B else jnp.pad(x, ((0, B_pad - B), (0, 0)))
    w_p = (w_normalized if C_pad == C
           else jnp.pad(w_normalized, ((0, C_pad - C), (0, 0))))
    x_f32 = x_f32 if B_pad == B else jnp.pad(x_f32, ((0, B_pad - B), (0, 0)))
    w_f32 = w_f32 if C_pad == C else jnp.pad(w_f32, ((0, C_pad - C), (0, 0)))

    # Per-row scale (F.normalize eps + ||outemb|| clamp), computed ONCE per
    # row instead of once per (row, class-tile) inside the kernel.
    xnorm = jnp.sqrt(jnp.sum(x_f32 * x_f32, axis=-1, keepdims=True))  # (B_pad,1)
    d1 = jnp.maximum(xnorm, 1e-12)              # F.normalize eps
    d2 = jnp.maximum(xnorm / d1, 1e-4)          # ||outemb|| clamp (==1 unless x==0)
    row_scale = 1.0 / (d1 * d2)                 # (B_pad, 1) f32

    # Per-class denominator of CosineSimilarity, computed ONCE.
    w_norm = jnp.sqrt(jnp.sum(w_f32 * w_f32, axis=-1, keepdims=True))  # (C_pad,1)
    inv_nb = (1.0 / jnp.maximum(w_norm, 1e-4)).reshape(1, C_pad)       # (1, C_pad)

    grid = (B_pad // tb, C_pad // tc)

    vmem_limit = int(min(budget, max(working_set(tb, tc) + (8 << 20), 32 << 20)))

    out = pl.pallas_call(
        _cos_classifier_kernel,
        out_shape=jax.ShapeDtypeStruct((B_pad, C_pad), out_dtype),
        grid_spec=pltpu.PrefetchScalarGridSpec(
            num_scalar_prefetch=0,
            grid=grid,
            in_specs=[
                pl.BlockSpec((tb, D), lambda i, j: (i, 0)),   # x: resident over j
                pl.BlockSpec((tc, D), lambda i, j: (j, 0)),   # W: re-streamed
                pl.BlockSpec((tb, 1), lambda i, j: (i, 0)),   # 1/||x|| row scale
                pl.BlockSpec((1, tc), lambda i, j: (0, j)),   # 1/||W|| col scale
            ],
            out_specs=pl.BlockSpec((tb, tc), lambda i, j: (i, j)),
        ),
        compiler_params=pltpu.CompilerParams(
            dimension_semantics=("parallel", "parallel"),
            vmem_limit_bytes=vmem_limit,
        ),
    )(x_p, w_p, row_scale, inv_nb)

    return out[:B, :C]


def _reference(x, w_normalized):
    """Pure-JAX reference mirroring the PyTorch forward."""
    xn = x / jnp.maximum(jnp.linalg.norm(x, axis=-1, keepdims=True), 1e-12)
    num = xn @ w_normalized.T
    na = jnp.maximum(jnp.linalg.norm(xn, axis=-1, keepdims=True), 1e-4)
    nb = jnp.maximum(jnp.linalg.norm(w_normalized, axis=-1, keepdims=True), 1e-4)
    return num / (na * nb.T)


if __name__ == "__main__":
    key = jax.random.PRNGKey(0)

    # Case 1: small shapes from the module spec (B embeddings, C sirna
    # prototypes, D embedding dim).
    B, C, D = 8, 16, 128
    k_emb, k_x, key = jax.random.split(key, 3)
    embavg = jax.random.normal(k_emb, (C, D), dtype=jnp.float32)
    w_normalized = embavg / jnp.maximum(
        jnp.linalg.norm(embavg, axis=-1, keepdims=True), 1e-12)
    x = jax.random.normal(k_x, (B, D), dtype=jnp.float32)

    out = jax.block_until_ready(cos_classifier(x, w_normalized))
    ref = _reference(x, w_normalized)
    assert out.shape == (B, C)
    assert jnp.allclose(out, ref, atol=1e-5, rtol=1e-5)

    # Case 2: non-aligned B/C to exercise the padded multi-tile path
    # (including a zero row hitting the eps clamps).
    B2, C2, D2 = 48, 160, 256
    k_emb2, k_x2, _ = jax.random.split(key, 3)
    embavg2 = jax.random.normal(k_emb2, (C2, D2), dtype=jnp.float32)
    w2 = embavg2 / jnp.maximum(
        jnp.linalg.norm(embavg2, axis=-1, keepdims=True), 1e-12)
    x2 = jax.random.normal(k_x2, (B2, D2), dtype=jnp.float32)
    x2 = x2.at[3].set(0.0)   # zero-row edge case

    out2 = jax.block_until_ready(cos_classifier(x2, w2))
    ref2 = _reference(x2, w2)
    assert out2.shape == (B2, C2)
    assert jnp.allclose(out2, ref2, atol=1e-5, rtol=1e-5)

    print("KERNEL_OK")
</pallas_src>

<mosaic_0001>
module attributes {stable_mosaic.version = 11 : i64} {
  func.func @_cos_classifier_kernel(%arg0: i32, %arg1: i32, %arg2: memref<8x128xf32, #tpu.memory_space<vmem>>, %arg3: memref<128x128xf32, #tpu.memory_space<vmem>>, %arg4: memref<8x1xf32, #tpu.memory_space<vmem>>, %arg5: memref<1x128xf32, #tpu.memory_space<vmem>>, %arg6: memref<8x128xf32, #tpu.memory_space<vmem>>) attributes {dimension_semantics = [#tpu.dimension_semantics<parallel>, #tpu.dimension_semantics<parallel>], iteration_bounds = array<i64: 1, 1>, scalar_prefetch = 0 : i64, scratch_operands = 0 : i64, tpu.core_type = #tpu.core_type<tc>, window_params = [{transform_indices = @transform_0, window_bounds = array<i64: 8, 128>}, {transform_indices = @transform_1, window_bounds = array<i64: 128, 128>}, {transform_indices = @transform_2, window_bounds = array<i64: 8, 1>}, {transform_indices = @transform_3, window_bounds = array<i64: 1, 128>}, {transform_indices = @transform_4, window_bounds = array<i64: 8, 128>}]} {
    %c0 = arith.constant 0 : index
    %c0_0 = arith.constant 0 : index
    %0 = vector.load %arg2[%c0, %c0_0] : memref<8x128xf32, #tpu.memory_space<vmem>>, vector<8x128xf32>
    %c0_1 = arith.constant 0 : index
    %c0_2 = arith.constant 0 : index
    %1 = vector.load %arg3[%c0_1, %c0_2] : memref<128x128xf32, #tpu.memory_space<vmem>>, vector<128x128xf32>
    %cst = arith.constant dense<0.000000e+00> : vector<8x128xf32>
    %2 = tpu.matmul %0, %1, %cst {dimension_numbers = #tpu.dot_dimension_numbers<[1], [1], [0], [0], [0, 0, 1, 0], [], []>} : vector<8x128xf32>, vector<128x128xf32>, vector<8x128xf32> -> vector<8x128xf32>
    %c0_3 = arith.constant 0 : index
    %c0_4 = arith.constant 0 : index
    %3 = vector.load %arg4[%c0_3, %c0_4] : memref<8x1xf32, #tpu.memory_space<vmem>>, vector<8x1xf32>
    %4 = vector.broadcast %3 : vector<8x1xf32> to vector<8x128xf32>
    %5 = arith.mulf %2, %4 : vector<8x128xf32>
    %c0_5 = arith.constant 0 : index
    %c0_6 = arith.constant 0 : index
    %6 = vector.load %arg5[%c0_5, %c0_6] : memref<1x128xf32, #tpu.memory_space<vmem>>, vector<1x128xf32>
    %7 = vector.broadcast %6 : vector<1x128xf32> to vector<8x128xf32>
    %8 = arith.mulf %5, %7 : vector<8x128xf32>
    %c0_7 = arith.constant 0 : index
    %c0_8 = arith.constant 0 : index
    %9 = vector.load %arg6[%c0_7, %c0_8] : memref<8x128xf32, #tpu.memory_space<vmem>>, vector<8x128xf32>
    tpu.vector_store %arg6[%c0_7, %c0_8], %8 {strides = array<i32>} : memref<8x128xf32, #tpu.memory_space<vmem>>, vector<8x128xf32>,
    return
  }
  func.func @transform_0(%arg0: i32, %arg1: i32) -> (i32, i32) {
    %c0_i32 = arith.constant 0 : i32
    %c0_i32_0 = arith.constant 0 : i32
    return %arg0, %c0_i32 : i32, i32
  }
  func.func @transform_1(%arg0: i32, %arg1: i32) -> (i32, i32) {
    %c0_i32 = arith.constant 0 : i32
    %c0_i32_0 = arith.constant 0 : i32
    return %arg1, %c0_i32 : i32, i32
  }
  func.func @transform_2(%arg0: i32, %arg1: i32) -> (i32, i32) {
    %c0_i32 = arith.constant 0 : i32
    %c0_i32_0 = arith.constant 0 : i32
    return %arg0, %c0_i32 : i32, i32
  }
  func.func @transform_3(%arg0: i32, %arg1: i32) -> (i32, i32) {
    %c0_i32 = arith.constant 0 : i32
    %c0_i32_0 = arith.constant 0 : i32
    return %c0_i32, %arg1 : i32, i32
  }
  func.func @transform_4(%arg0: i32, %arg1: i32) -> (i32, i32) {
    %c0_i32 = arith.constant 0 : i32
    return %arg0, %arg1 : i32, i32
  }
}

</mosaic_0001>

<llo_original>
// kernel: cos_classifier.1
$region0: #{cos_classifier.1}
  #allocation0 [shape = 'u32[]', space=smem, size = 0x4, offset = 0x4, fixed_abs, tag = 'smem constant byte address 0x4 - core index']
  #allocation1 [shape = 'u32[144,128]{1,0:T(1,128)}', space=vmem, size = 0x12000, scoped, tag = 'internal scratch']
  %s0 = inlined_call_operand.vmem [shape: f32[8,128], index: 0, kind: input, shape index: {}]
  %s1 = inlined_call_operand.vmem [shape: f32[128,128], index: 1, kind: input, shape index: {}]
  %s2 = inlined_call_operand.vmem [shape: f32[8,1], index: 2, kind: input, shape index: {}]
  %s3 = inlined_call_operand.vmem [shape: f32[1,128], index: 3, kind: input, shape index: {}]
  %s4 = inlined_call_operand.hbm [shape: f32[8,128], index: 4, kind: output, shape index: {}]
  %s5 = sld [smem:[#allocation0]]
  $region26: #{cos_classifier.1} parent=0
    _
  %s7 = ssub.s32 1, %s5
  %s8 = scalar_select 0, %s7, %s5
  $region1: #{cos_classifier.1} parent=0
    #allocation2 [shape = 'u8[4096]{0}', space=vmem, size = 0x1000, scoped, tag = 'output window, operand 0, single buffered']
    #allocation3 [shape = 's32[1]{0}', space=sflag, size = 0x4, scoped, tag = 'scoped memory for cos_classifier.1']
    %9 = vsyncpa [#allocation3], 0
    // Predicated region
    $region2: #{cos_classifier.1} parent=1 // pred_check
      _
    $region3: #{cos_classifier.1} parent=1 // pred_check_branch
      %11 = sbr.rel (0) target = $region5
    $region4: #{cos_classifier.1} parent=1 // pred_region
      _
    $region5: #{cos_classifier.1} parent=1 // pred_fallthru
      _
    // Predicated region
    $region6: #{cos_classifier.1} parent=1 // pred_check
      _
    $region7: #{cos_classifier.1} parent=1 // pred_check_branch
      %13 = sbr.rel (0) target = $region9
    $region8: #{cos_classifier.1} parent=1 // pred_region
      _
    $region9: #{cos_classifier.1} parent=1 // pred_fallthru
      _
    // Predicated region
    $region10: #{cos_classifier.1} parent=1 // pred_check
      _
    $region11: #{cos_classifier.1} parent=1 // pred_check_branch
      %15 = sbr.rel (0) target = $region13
    $region12: #{cos_classifier.1} parent=1 // pred_region
      _
    $region13: #{cos_classifier.1} parent=1 // pred_fallthru
      _
    // Predicated region
    $region14: #{cos_classifier.1} parent=1 // pred_check
      _
    $region15: #{cos_classifier.1} parent=1 // pred_check_branch
      %17 = sbr.rel (0) target = $region17
    $region16: #{cos_classifier.1} parent=1 // pred_region
      _
    $region17: #{cos_classifier.1} parent=1 // pred_fallthru
      _
    %v18 = vld [vmem:[%s0] sm:$0xff]
    %v19 = vld [vmem:[%s1] sm:$0xff]
    %v20 = vld [vmem:[%s1 + $0x8] sm:$0xff]
    %v21 = vld [vmem:[%s1 + $0x10] sm:$0xff]
    %v22 = vld [vmem:[%s1 + $0x18] sm:$0xff]
    %v23 = vld [vmem:[%s1 + $0x20] sm:$0xff]
    %v24 = vld [vmem:[%s1 + $0x28] sm:$0xff]
    %v25 = vld [vmem:[%s1 + $0x30] sm:$0xff]
    %v26 = vld [vmem:[%s1 + $0x38] sm:$0xff]
    %v27 = vld [vmem:[%s1 + $0x40] sm:$0xff]
    %v28 = vld [vmem:[%s1 + $0x48] sm:$0xff]
    %v29 = vld [vmem:[%s1 + $0x50] sm:$0xff]
    %v30 = vld [vmem:[%s1 + $0x58] sm:$0xff]
    %v31 = vld [vmem:[%s1 + $0x60] sm:$0xff]
    %v32 = vld [vmem:[%s1 + $0x68] sm:$0xff]
    %v33 = vld [vmem:[%s1 + $0x70] sm:$0xff]
    %v34 = vld [vmem:[%s1 + $0x78] sm:$0xff]
    %35 = vmatprep.subr.mxu0 0.0
    %36 = vmatpush1.xpose.msra.mxu0 %v19
    %37 = vmatprep.subr.mxu0 0.0
    %38 = vmatpush1.xpose.msra.mxu0 %v20
    %39 = vmatprep.subr.mxu0 0.0
    %40 = vmatpush1.xpose.msra.mxu0 %v21
    %41 = vmatprep.subr.mxu0 0.0
    %42 = vmatpush1.xpose.msra.mxu0 %v22
    %43 = vmatprep.subr.mxu0 0.0
    %44 = vmatpush1.xpose.msra.mxu0 %v23
    %45 = vmatprep.subr.mxu0 0.0
    %46 = vmatpush1.xpose.msra.mxu0 %v24
    %47 = vmatprep.subr.mxu0 0.0
    %48 = vmatpush1.xpose.msra.mxu0 %v25
    %49 = vmatprep.subr.mxu0 0.0
    %50 = vmatpush1.xpose.msra.mxu0 %v26
    %51 = vmatprep.subr.mxu0 0.0
    %52 = vmatpush1.xpose.msra.mxu0 %v27
    %53 = vmatprep.subr.mxu0 0.0
    %54 = vmatpush1.xpose.msra.mxu0 %v28
    %55 = vmatprep.subr.mxu0 0.0
    %56 = vmatpush1.xpose.msra.mxu0 %v29
    %57 = vmatprep.subr.mxu0 0.0
    %58 = vmatpush1.xpose.msra.mxu0 %v30
    %59 = vmatprep.subr.mxu0 0.0
    %60 = vmatpush1.xpose.msra.mxu0 %v31
    %61 = vmatprep.subr.mxu0 0.0
    %62 = vmatpush1.xpose.msra.mxu0 %v32
    %63 = vmatprep.subr.mxu0 0.0
    %64 = vmatpush1.xpose.msra.mxu0 %v33
    %65 = vmatprep.subr.mxu0 0.0
    %66 = vmatpush1.xpose.msra.mxu0 %v34
    %67 = vmatprep.subr.mxu0 0.0
    %68 = vmatpush1.xpose.msra.mxu0 0.0
    %69 = vmatprep.subr.mxu0 0.0
    %70 = vmatpush1.xpose.msra.mxu0 0.0
    %71 = vmatprep.subr.mxu0 0.0
    %72 = vmatpush1.xpose.msra.mxu0 0.0
    %73 = vmatprep.subr.mxu0 0.0
    %74 = vmatpush1.xpose.msra.mxu0 0.0
    %75 = vmatprep.subr.mxu0 0.0
    %76 = vmatpush1.xpose.msra.mxu0 0.0
    %77 = vmatprep.subr.mxu0 0.0
    %78 = vmatpush1.xpose.msra.mxu0 0.0
    %79 = vmatprep.subr.mxu0 0.0
    %80 = vmatpush1.xpose.msra.mxu0 0.0
    %81 = vmatprep.subr.mxu0 0.0
    %82 = vmatpush1.xpose.msra.mxu0 0.0
    %83 = vmatprep.subr.mxu0 0.0
    %84 = vmatpush1.xpose.msra.mxu0 0.0
    %85 = vmatprep.subr.mxu0 0.0
    %86 = vmatpush1.xpose.msra.mxu0 0.0
    %87 = vmatprep.subr.mxu0 0.0
    %88 = vmatpush1.xpose.msra.mxu0 0.0
    %89 = vmatprep.subr.mxu0 0.0
    %90 = vmatpush1.xpose.msra.mxu0 0.0
    %91 = vmatprep.subr.mxu0 0.0
    %92 = vmatpush1.xpose.msra.mxu0 0.0
    %93 = vmatprep.subr.mxu0 0.0
    %94 = vmatpush1.xpose.msra.mxu0 0.0
    %95 = vmatprep.subr.mxu0 0.0
    %96 = vmatpush1.xpose.msra.mxu0 0.0
    %97 = vmatprep.subr.mxu0 0.0
    %98 = vmatpush1.xpose.msra.mxu0 0.0
    %99 = vmatprep.mubr.f32.mxu0 0.0
    %100 = vmatmul.mubr.f32.gmra.mrb[0].mxu0 %v18
    %v101 = vpop.f32.mrb[0].mxu0
    %v102 = vadd.f32 0.0, %v101
    %v103 = vpop.f32.mrb[0].mxu0
    %104 = vdwg.mxu0
    %v105 = vld [vmem:[%s2] sm:$0xff]
    %107 = vset.pattern.permute.xlu0 0
    %108 = vperm.xlu0 %107, %v105
    %v109 = vpop.permute.xlu0 %108
    %v111 = vmul.f32 %v102, %v109
    %v112 = vld [vmem:[%s3] sm:$0x1]
    %v114 = vlaneseq
    %v115 = vshrl.u32 %v114, 7
    %v116 = vsub.s32 0, %v115
    %v117 = vrot.slane %v112, %v116
    %v119 = vmul.f32 %v111, %v117
    %120 = vst [vmem:[#allocation2] sm:$0xff] %v119
    // Predicated region
    $region18: #{cos_classifier.1} parent=1 // pred_check
      _
    $region19: #{cos_classifier.1} parent=1 // pred_check_branch
      %122 = sbr.rel (0) target = $region21
    $region20: #{cos_classifier.1} parent=1 // pred_region
      %s124 = ssub.s32 128, 128
      %125 = vsyncadd [#allocation3], %s124
      %s127 = sshll.u32 [#allocation2], 4
      %s128 = int_to_ptr.vmem [resolvable:$true] %s127
      %130 = dma.vmem_to_hbm [thread:$0]  %s128, 128, %s4, [#allocation3]
    $region21: #{cos_classifier.1} parent=1 // pred_fallthru
      _
    // Predicated region
    $region22: #{cos_classifier.1} parent=1 // pred_check
      _
    $region23: #{cos_classifier.1} parent=1 // pred_check_branch
      %132 = sbr.rel (0) target = $region25
    $region24: #{cos_classifier.1} parent=1 // pred_region
      %133 = dma.done [#allocation3], 128
    $region25: #{cos_classifier.1} parent=1 // pred_fallthru
      _
    %134 = vsyncpa [#allocation3], 1

</llo_original>
